<compile_context>
chip_gen: v7x
topology: tpu7x:2x2x1
jax: 0.10.0
libtpu: 0.0.40
codegen_flags: <defaults>
</compile_context>

<pallas_src>
import functools

import jax
import jax.numpy as jnp
from jax.experimental import pallas as pl
from jax.experimental.pallas import tpu as pltpu

ALPHA = 0.25   # unused in forward (matches the PyTorch module)
GAMMA = 2

# "parameter" of the module, initialized deterministically in-script (unused).
# TODO(synk): self.alpha is never read in the PyTorch forward(); kept for fidelity.
alpha_param = jnp.array([ALPHA, 1.0 - ALPHA], dtype=jnp.float32)

LANES = 128
SUBLANES = 8
MAX_TILE_ROWS = 8192                 # (8192,128) f32 = 4 MiB/buffer
VMEM_LIMIT_BYTES = 32 * 1024 * 1024  # 16 MiB live (2 in x 2 bufs) + headroom
PAD_X = -1e30                        # sentinel logit: focal loss is exactly 0.0


def _round_up(x, m):
    return -(-x // m) * m


def _focal_partial_kernel(x_ref, t_ref, out_ref, *, gamma):
    tile_rows = x_ref.shape[0]
    # Cast per-tile on the VPU (inputs stream in their original dtype).
    x = x_ref[...].astype(jnp.float32)
    t = t_ref[...].astype(jnp.float32)

    # Numerically stable BCE-with-logits (matches torch's formulation).
    bce = jnp.maximum(x, 0.0) - x * t + jnp.log1p(jnp.exp(-jnp.abs(x)))
    pt = jnp.exp(-bce)
    q = 1.0 - pt

    # (1 - pt)**gamma * BCE : integer gamma stays on the VALU with gamma-1
    # multiplies (no ones-broadcast, no exp/log pow lowering).
    if isinstance(gamma, int):
        if gamma <= 0:
            f_loss = bce
        else:
            w = q
            for _ in range(gamma - 1):
                w = w * q
            f_loss = w * bce
    else:
        f_loss = (q ** gamma) * bce

    # Fold the tile down to one (8,128) vreg of partial sums with pure VPU
    # adds (reshape preserves the (8,128) tiling; no cross-lane XLU work).
    partial = jnp.sum(
        f_loss.reshape(tile_rows // SUBLANES, SUBLANES, LANES), axis=0)
    out_ref[...] = partial[None]


def _partial_sums(x2d, t2d, tile_rows, gamma):
    """Sum of focal losses over a (rows,128) array with rows % tile_rows == 0."""
    rows = x2d.shape[0]
    num_blocks = rows // tile_rows
    kernel = functools.partial(_focal_partial_kernel, gamma=gamma)
    partials = pl.pallas_call(
        kernel,
        out_shape=jax.ShapeDtypeStruct((num_blocks, SUBLANES, LANES),
                                       jnp.float32),
        grid_spec=pltpu.PrefetchScalarGridSpec(
            num_scalar_prefetch=0,
            grid=(num_blocks,),
            in_specs=[
                pl.BlockSpec((tile_rows, LANES), lambda i: (i, 0)),
                pl.BlockSpec((tile_rows, LANES), lambda i: (i, 0)),
            ],
            out_specs=pl.BlockSpec((1, SUBLANES, LANES), lambda i: (i, 0, 0)),
        ),
        compiler_params=pltpu.CompilerParams(
            # Blocks are independent -> megacore-friendly on v7x.
            dimension_semantics=("parallel",),
            vmem_limit_bytes=VMEM_LIMIT_BYTES,
        ),
    )(x2d, t2d)
    # Final (tiny) reduction of the per-block vreg partial sums in f32.
    return jnp.sum(partials)


def _padded_partial_sum(x_flat, t_flat, gamma):
    """Arbitrary-length slice: pads ONLY this slice with sentinel values whose
    focal loss is exactly 0.0 (no in-kernel mask needed), then reuses the same
    kernel with its own tiling (handles any tail size)."""
    n = x_flat.shape[0]
    rows = _round_up(-(-n // LANES), SUBLANES)
    tile_rows = min(MAX_TILE_ROWS, rows)
    padded_rows = _round_up(rows, tile_rows)
    pad = padded_rows * LANES - n
    x2d = jnp.pad(x_flat, (0, pad),
                  constant_values=PAD_X).reshape(padded_rows, LANES)
    t2d = jnp.pad(t_flat, (0, pad),
                  constant_values=0).reshape(padded_rows, LANES)
    return _partial_sums(x2d, t2d, tile_rows, gamma)


def _choose_main_tiling(rows8):
    """rows8: 128-lane rows fully covered by the input, floored to a multiple
    of SUBLANES.  Returns (tile_rows, num_blocks); num_blocks*tile_rows <= rows8
    (the tiny row remainder joins the tail)."""
    blocks = -(-rows8 // MAX_TILE_ROWS)            # VMEM-capped minimum
    if rows8 >= 2 * SUBLANES:
        blocks = max(2, blocks)                    # v7x: feed both TensorCores
        blocks += blocks % 2                       # ... with an even block count
    tile_rows = max(SUBLANES,
                    min(MAX_TILE_ROWS,
                        (rows8 // blocks) // SUBLANES * SUBLANES))
    num_blocks = rows8 // tile_rows
    return tile_rows, num_blocks


@functools.partial(jax.jit, static_argnames=("gamma",))
def weighted_focal_loss(inputs, targets, gamma=GAMMA):
    """inputs, targets: same shape (e.g. NCHW) float logits / {0,1} targets.
    Targets/inputs may be bf16/int8/bool; the kernel casts per-tile in VMEM."""
    assert inputs.shape == targets.shape
    total = int(inputs.size)

    flat_x = inputs.reshape(-1)
    flat_t = targets.reshape(-1)

    # Aligned prefix: streamed directly from the original arrays, no padding,
    # no mask.
    rows8 = (total // (SUBLANES * LANES)) * SUBLANES
    if rows8 > 0:
        tile_rows, num_blocks = _choose_main_tiling(rows8)
        main_rows = num_blocks * tile_rows
    else:
        main_rows = 0
    main_total = main_rows * LANES

    loss_sum = jnp.float32(0.0)
    if main_total > 0:
        x_main = flat_x[:main_total].reshape(main_rows, LANES)
        t_main = flat_t[:main_total].reshape(main_rows, LANES)
        loss_sum = loss_sum + _partial_sums(x_main, t_main, tile_rows, gamma)

    # Tail: only this (small, bounded) slice is padded, with sentinels.
    if total - main_total > 0:
        loss_sum = loss_sum + _padded_partial_sum(
            flat_x[main_total:], flat_t[main_total:], gamma)

    return loss_sum / jnp.float32(total)


def _reference(inputs, targets, gamma=GAMMA):
    x = inputs.astype(jnp.float32)
    t = targets.astype(jnp.float32)
    bce = jnp.maximum(x, 0.0) - x * t + jnp.log1p(jnp.exp(-jnp.abs(x)))
    pt = jnp.exp(-bce)
    return jnp.mean((1.0 - pt) ** gamma * bce)


if __name__ == "__main__":
    key = jax.random.PRNGKey(0)
    k1, k2 = jax.random.split(key)

    # NCHW logits and binary targets, small shapes.
    N, C, H, W = 2, 4, 16, 16
    inputs = jax.random.normal(k1, (N, C, H, W), dtype=jnp.float32) * 2.0
    targets = jax.random.bernoulli(k2, 0.3, (N, C, H, W)).astype(jnp.float32)

    loss = weighted_focal_loss(inputs, targets)
    loss = jax.block_until_ready(loss)

    ref = _reference(inputs, targets)
    assert jnp.allclose(loss, ref, rtol=1e-5, atol=1e-6), (loss, ref)

    # Also exercise a non-multiple-of-(8*128) size to cover the tail path.
    odd = jax.random.normal(k1, (3, 5, 7, 11), dtype=jnp.float32)
    odd_t = jax.random.bernoulli(k2, 0.5, (3, 5, 7, 11)).astype(jnp.float32)
    loss2 = jax.block_until_ready(weighted_focal_loss(odd, odd_t))
    ref2 = _reference(odd, odd_t)
    assert jnp.allclose(loss2, ref2, rtol=1e-5, atol=1e-6), (loss2, ref2)

    print("KERNEL_OK")
</pallas_src>

<mosaic_0001>
module attributes {stable_mosaic.version = 11 : i64} {
  func.func @_focal_partial_kernel(%arg0: i32, %arg1: memref<8x128xf32, #tpu.memory_space<vmem>>, %arg2: memref<8x128xf32, #tpu.memory_space<vmem>>, %arg3: memref<1x8x128xf32, #tpu.memory_space<vmem>>) attributes {dimension_semantics = [#tpu.dimension_semantics<parallel>], iteration_bounds = array<i64: 2>, scalar_prefetch = 0 : i64, scratch_operands = 0 : i64, tpu.core_type = #tpu.core_type<tc>, window_params = [{transform_indices = @transform_0, window_bounds = array<i64: 8, 128>}, {transform_indices = @transform_1, window_bounds = array<i64: 8, 128>}, {transform_indices = @transform_2, window_bounds = array<i64: 1, 8, 128>}]} {
    %c0 = arith.constant 0 : index
    %c0_0 = arith.constant 0 : index
    %0 = vector.load %arg1[%c0, %c0_0] : memref<8x128xf32, #tpu.memory_space<vmem>>, vector<8x128xf32>
    %c0_1 = arith.constant 0 : index
    %c0_2 = arith.constant 0 : index
    %1 = vector.load %arg2[%c0_1, %c0_2] : memref<8x128xf32, #tpu.memory_space<vmem>>, vector<8x128xf32>
    %cst = arith.constant 0.000000e+00 : f32
    %2 = vector.broadcast %cst : f32 to vector<8x128xf32>
    %3 = arith.maximumf %0, %2 : vector<8x128xf32>
    %4 = arith.mulf %0, %1 : vector<8x128xf32>
    %5 = arith.subf %3, %4 : vector<8x128xf32>
    %6 = math.absf %0 : vector<8x128xf32>
    %cst_3 = arith.constant 0.000000e+00 : f32
    %7 = vector.broadcast %cst_3 : f32 to vector<8x128xf32>
    %8 = arith.subf %7, %6 : vector<8x128xf32>
    %9 = math.exp %8 : vector<8x128xf32>
    %10 = math.log1p %9 : vector<8x128xf32>
    %11 = arith.addf %5, %10 : vector<8x128xf32>
    %cst_4 = arith.constant 0.000000e+00 : f32
    %12 = vector.broadcast %cst_4 : f32 to vector<8x128xf32>
    %13 = arith.subf %12, %11 : vector<8x128xf32>
    %14 = math.exp %13 : vector<8x128xf32>
    %cst_5 = arith.constant 1.000000e+00 : f32
    %15 = vector.broadcast %cst_5 : f32 to vector<8x128xf32>
    %16 = arith.subf %15, %14 : vector<8x128xf32>
    %17 = arith.mulf %16, %16 : vector<8x128xf32>
    %18 = arith.mulf %17, %11 : vector<8x128xf32>
    %19 = vector.shape_cast %18 : vector<8x128xf32> to vector<1x8x128xf32>
    %cst_6 = arith.constant dense<0.000000e+00> : vector<8x128xf32>
    %20 = vector.multi_reduction <add>, %19, %cst_6 [0] : vector<1x8x128xf32> to vector<8x128xf32>
    %21 = vector.shape_cast %20 : vector<8x128xf32> to vector<1x8x128xf32>
    %c0_7 = arith.constant 0 : index
    %c0_8 = arith.constant 0 : index
    %c0_9 = arith.constant 0 : index
    %22 = vector.load %arg3[%c0_7, %c0_8, %c0_9] : memref<1x8x128xf32, #tpu.memory_space<vmem>>, vector<1x8x128xf32>
    tpu.vector_store %arg3[%c0_7, %c0_8, %c0_9], %21 {strides = array<i32>} : memref<1x8x128xf32, #tpu.memory_space<vmem>>, vector<1x8x128xf32>,
    return
  }
  func.func @transform_0(%arg0: i32) -> (i32, i32) {
    %c0_i32 = arith.constant 0 : i32
    %c0_i32_0 = arith.constant 0 : i32
    return %arg0, %c0_i32 : i32, i32
  }
  func.func @transform_1(%arg0: i32) -> (i32, i32) {
    %c0_i32 = arith.constant 0 : i32
    %c0_i32_0 = arith.constant 0 : i32
    return %arg0, %c0_i32 : i32, i32
  }
  func.func @transform_2(%arg0: i32) -> (i32, i32, i32) {
    %c0_i32 = arith.constant 0 : i32
    %c0_i32_0 = arith.constant 0 : i32
    %c0_i32_1 = arith.constant 0 : i32
    return %arg0, %c0_i32, %c0_i32_0 : i32, i32, i32
  }
}

</mosaic_0001>

<llo_original>
// kernel: weighted_focal_loss.1
$region0: #{weighted_focal_loss.1}
  #allocation0 [shape = 'u32[]', space=smem, size = 0x4, offset = 0x4, fixed_abs, tag = 'smem constant byte address 0x4 - core index']
  #allocation1 [shape = 'u32[144,128]{1,0:T(1,128)}', space=vmem, size = 0x12000, scoped, tag = 'internal scratch']
  %s0 = inlined_call_operand.vmem [shape: f32[16,128], index: 0, kind: input, shape index: {}]
  %s1 = inlined_call_operand.vmem [shape: f32[16,128], index: 1, kind: input, shape index: {}]
  %s2 = inlined_call_operand.vmem [shape: f32[2,8,128], index: 2, kind: output, shape index: {}]
  %s3 = sld [smem:[#allocation0]]
  $region41: #{weighted_focal_loss.1} parent=0
    _
  %s5 = ssub.s32 1, %s3
  %s6 = scalar_select 0, %s5, %s3
  loop: start=0, step=1, limit=4
  $region2: #{weighted_focal_loss.1} parent=0 // loop_pre_header
    _
  $region3: #{weighted_focal_loss.1} parent=0 // loop_header
    %s8 = sphi 0, %s12
    %p9 = scmp.ge.s32.totalorder %s8, 4
    %s18 = sphi 0, %s20
    %s21 = sphi 0, %s18
    %s22 = sphi 0, %s21
    %s38 = sphi 0, %s22
    %s44 = sphi 0, %s46
    %s47 = sphi 0, %s44
    %s48 = sphi 0, %s47
    %s64 = sphi 0, %s48
    %s70 = sphi 0, %s72
    %s73 = sphi 0, %s70
    %s74 = sphi 0, %s73
    %s90 = sphi 0, %s74
  $region4: #{weighted_focal_loss.1} parent=0 // loop_header_branch
    %11 = sbr.rel (%p9) target = $region8
  $region5: #{weighted_focal_loss.1} parent=0 // loop_body
    %s13 = ssub.s32 %s8, 1
    %s14 = ssub.s32 %s8, 2
    %s15 = sadd.s32 %s8, 1
    %s16 = ssub.s32 %s8, %s15
    %p17 = scmp.eq.s32.totalorder %s16, 0
    %s19 = sadd.s32 %s18, 1
    %s20 = scalar_select %p17, %s18, %s19
    %p23 = pneg %p17
    %p24 = scmp.eq.s32.totalorder %s8, 1
    %p25 = por %p23, %p24
    %p26 = scmp.ne.s32.totalorder %s18, %s21
    %p27 = scmp.eq.s32.totalorder %s8, 0
    %p28 = por %p26, %p27
    %p29 = scmp.ne.s32.totalorder %s18, %s21
    %p30 = scmp.eq.s32.totalorder %s13, 1
    %p31 = por %p29, %p30
    %p32 = scmp.ne.s32.totalorder %s21, %s22
    %p33 = scmp.eq.s32.totalorder %s13, 0
    %p34 = por %p32, %p33
    %p35 = scmp.ne.s32.totalorder %s21, %s22
    %p36 = scmp.eq.s32.totalorder %s14, 1
    %p37 = por %p35, %p36
    %p39 = scmp.ne.s32.totalorder %s22, %s38
    %p40 = scmp.eq.s32.totalorder %s14, 0
    %p41 = por %p39, %p40
    %s42 = ssub.s32 %s8, %s15
    %p43 = scmp.eq.s32.totalorder %s42, 0
    %s45 = sadd.s32 %s44, 1
    %s46 = scalar_select %p43, %s44, %s45
    %p49 = pneg %p43
    %p50 = scmp.eq.s32.totalorder %s8, 1
    %p51 = por %p49, %p50
    %p52 = scmp.ne.s32.totalorder %s44, %s47
    %p53 = scmp.eq.s32.totalorder %s8, 0
    %p54 = por %p52, %p53
    %p55 = scmp.ne.s32.totalorder %s44, %s47
    %p56 = scmp.eq.s32.totalorder %s13, 1
    %p57 = por %p55, %p56
    %p58 = scmp.ne.s32.totalorder %s47, %s48
    %p59 = scmp.eq.s32.totalorder %s13, 0
    %p60 = por %p58, %p59
    %p61 = scmp.ne.s32.totalorder %s47, %s48
    %p62 = scmp.eq.s32.totalorder %s14, 1
    %p63 = por %p61, %p62
    %p65 = scmp.ne.s32.totalorder %s48, %s64
    %p66 = scmp.eq.s32.totalorder %s14, 0
    %p67 = por %p65, %p66
    %s68 = ssub.s32 %s8, %s15
    %p69 = scmp.eq.s32.totalorder %s68, 0
    %s71 = sadd.s32 %s70, 1
    %s72 = scalar_select %p69, %s70, %s71
    %p75 = pneg %p69
    %p76 = scmp.eq.s32.totalorder %s8, 1
    %p77 = por %p75, %p76
    %p78 = scmp.ne.s32.totalorder %s70, %s73
    %p79 = scmp.eq.s32.totalorder %s8, 0
    %p80 = por %p78, %p79
    %p81 = scmp.ne.s32.totalorder %s70, %s73
    %p82 = scmp.eq.s32.totalorder %s13, 1
    %p83 = por %p81, %p82
    %p84 = scmp.ne.s32.totalorder %s73, %s74
    %p85 = scmp.eq.s32.totalorder %s13, 0
    %p86 = por %p84, %p85
    %p87 = scmp.ne.s32.totalorder %s73, %s74
    %p88 = scmp.eq.s32.totalorder %s14, 1
    %p89 = por %p87, %p88
    %p91 = scmp.ne.s32.totalorder %s74, %s90
    %p92 = scmp.eq.s32.totalorder %s14, 0
    %p93 = por %p91, %p92
    %p94 = scmp.le.s32.totalorder 1, %s8
    %p95 = scmp.lt.s32.totalorder %s8, 3
    %p96 = pnand %p94, %p95
    %p97 = pneg %p96
    // Predicated region
    $region9: #{weighted_focal_loss.1} parent=5 // pred_check
      _
    $region10: #{weighted_focal_loss.1} parent=5 // pred_check_branch
      %99 = sbr.rel (%p96) target = $region12
    $region11: #{weighted_focal_loss.1} parent=5 // pred_region
      %s100 = ssub.s32 %s8, 1
    $region12: #{weighted_focal_loss.1} parent=5 // pred_fallthru
      _
    %p101 = scmp.lt.s32.totalorder %s8, 2
    // Predicated region
    $region13: #{weighted_focal_loss.1} parent=5 // pred_check
      %p102 = pneg %p101
    $region14: #{weighted_focal_loss.1} parent=5 // pred_check_branch
      %104 = sbr.rel (%p102) target = $region16
    $region15: #{weighted_focal_loss.1} parent=5 // pred_region
      // Predicated region
      $region17: #{weighted_focal_loss.1} parent=15 // pred_check
        %p105 = pneg %p28
      $region18: #{weighted_focal_loss.1} parent=15 // pred_check_branch
        %107 = sbr.rel (%p105) target = $region20
      $region19: #{weighted_focal_loss.1} parent=15 // pred_region
        %p108 = scmp.lt.s32.totalorder %s8, 1
        %s109 = scalar_select %p108, %s8, 1
        %s110 = smul.addr %s109, 8
        %s111 = scalar_lea.vmem %s0, %s110
      $region20: #{weighted_focal_loss.1} parent=15 // pred_fallthru
        _
      // Predicated region
      $region21: #{weighted_focal_loss.1} parent=15 // pred_check
        %p112 = pneg %p54
      $region22: #{weighted_focal_loss.1} parent=15 // pred_check_branch
        %114 = sbr.rel (%p112) target = $region24
      $region23: #{weighted_focal_loss.1} parent=15 // pred_region
        %p115 = scmp.lt.s32.totalorder %s8, 1
        %s116 = scalar_select %p115, %s8, 1
        %s117 = smul.addr %s116, 8
        %s118 = scalar_lea.vmem %s1, %s117
      $region24: #{weighted_focal_loss.1} parent=15 // pred_fallthru
        _
    $region16: #{weighted_focal_loss.1} parent=5 // pred_fallthru
      _
    %p119 = scmp.le.s32.totalorder 1, %s8
    %p120 = scmp.lt.s32.totalorder %s8, 3
    %p121 = pnand %p119, %p120
    %p122 = pneg %p121
    // Predicated region
    $region25: #{weighted_focal_loss.1} parent=5 // pred_check
      _
    $region26: #{weighted_focal_loss.1} parent=5 // pred_check_branch
      %124 = sbr.rel (%p121) target = $region28
    $region27: #{weighted_focal_loss.1} parent=5 // pred_region
      %s125 = ssub.s32 %s8, 1
      %p126 = scmp.lt.s32.totalorder %s13, 1
      %s127 = scalar_select %p126, %s13, 1
      %s128 = smul.addr %s127, 8
      %s129 = scalar_lea.vmem %s0, %s128
      %p130 = pneg %p34
      %p131 = pneg %p31
      %p132 = scmp.lt.s32.totalorder %s13, 1
      %s133 = scalar_select %p132, %s13, 1
      %s134 = smul.addr %s133, 8
      %s135 = scalar_lea.vmem %s1, %s134
      %p136 = pneg %p60
      %p137 = pneg %p57
      %p138 = pneg %p86
      %p139 = pneg %p83
      %p140 = scmp.lt.s32.totalorder %s13, 1
      %s141 = scalar_select %p140, %s13, 1
      %s142 = smul.addr %s141, 8
      %s143 = scalar_lea.vmem %s2, %s142
      %p144 = scmp.lt.s32.totalorder %s13, 1
      %s145 = scalar_select %p144, %s13, 1
      %s146 = smul.addr %s145, 8
      %s147 = scalar_lea.vmem %s0, %s146
      %p148 = scmp.lt.s32.totalorder %s13, 1
      %s149 = scalar_select %p148, %s13, 1
      %s150 = smul.addr %s149, 8
      %s151 = scalar_lea.vmem %s1, %s150
      %p152 = scmp.lt.s32.totalorder %s13, 1
      %s153 = scalar_select %p152, %s13, 1
      %s154 = smul.addr %s153, 8
      %s155 = scalar_lea.vmem %s2, %s154
      %v156 = vld [vmem:[%s147] sm:$0xff]
      %v157 = vld [vmem:[%s151] sm:$0xff]
      %v158 = vmax.f32 %v156, 0.0
      %v159 = vmul.f32 %v156, %v157
      %v160 = vsub.f32 %v158, %v159
      %v161 = vand.u32 2147483647, %v156
      %v162 = vsub.f32 0.0, %v161
      %v163 = vmul.f32 %v162, 1.442695
      %v164 = vpow.pop %v163
      %v165 = vadd.f32 %v164, 1.0
      %v166 = vlog2.pop %v165
      %v167 = vmul.f32 %v166, 0.6931472
      %v168 = vmul.f32 -0.5, %v164
      %v169 = vadd.f32 %v168, 1.0
      %v170 = vmul.f32 %v169, %v164
      %v171 = vand.u32 2147483647, %v164
      %vm172 = vcmp.lt.f32.partialorder %v171, 0.0004427343
      %v173 = vsel %vm172, %v170, %v167
      %v174 = vadd.f32 %v160, %v173
      %v175 = vsub.f32 0.0, %v174
      %v176 = vmul.f32 %v175, 1.442695
      %v177 = vpow.pop %v176
      %v178 = vsub.f32 1.0, %v177
      %v179 = vmul.f32 %v178, %v178
      %v180 = vmul.f32 %v179, %v174
      %v181 = vadd.f32 %v180, 0.0
      %182 = vst [vmem:[%s155] sm:$0xff] %v181
      %p183 = scmp.lt.s32.totalorder %s13, 1
      %s184 = scalar_select %p183, %s13, 1
      %s185 = smul.addr %s184, 8
      %s186 = scalar_lea.vmem %s2, %s185
      // Predicated region
      $region29: #{weighted_focal_loss.1} parent=27 // pred_check
        %p187 = pneg %p83
      $region30: #{weighted_focal_loss.1} parent=27 // pred_check_branch
        %189 = sbr.rel (%p187) target = $region32
      $region31: #{weighted_focal_loss.1} parent=27 // pred_region
        _
      $region32: #{weighted_focal_loss.1} parent=27 // pred_fallthru
        _
    $region28: #{weighted_focal_loss.1} parent=5 // pred_fallthru
      _
    %p190 = scmp.le.s32.totalorder 2, %s8
    // Predicated region
    $region33: #{weighted_focal_loss.1} parent=5 // pred_check
      %p191 = pneg %p190
    $region34: #{weighted_focal_loss.1} parent=5 // pred_check_branch
      %193 = sbr.rel (%p191) target = $region36
    $region35: #{weighted_focal_loss.1} parent=5 // pred_region
      %s194 = ssub.s32 %s8, 2
      // Predicated region
      $region37: #{weighted_focal_loss.1} parent=35 // pred_check
        %p195 = pneg %p89
      $region38: #{weighted_focal_loss.1} parent=35 // pred_check_branch
        %197 = sbr.rel (%p195) target = $region40
      $region39: #{weighted_focal_loss.1} parent=35 // pred_region
        %p198 = scmp.lt.s32.totalorder %s14, 1
        %s199 = scalar_select %p198, %s14, 1
        %s200 = smul.addr %s199, 8
        %s201 = scalar_lea.vmem %s2, %s200
      $region40: #{weighted_focal_loss.1} parent=35 // pred_fallthru
        _
    $region36: #{weighted_focal_loss.1} parent=5 // pred_fallthru
      _
  $region6: #{weighted_focal_loss.1} parent=0 // loop_footer
    %s12 = sadd.s32 1, %s8
  $region7: #{weighted_focal_loss.1} parent=0 // loop_footer_branch
    %7 = sbr.rel target = $region3
  $region8: #{weighted_focal_loss.1} parent=0 // loop_exit
    _

</llo_original>
